<compile_context>
chip_gen: v6e
topology: v6e:2x2x1
jax: 0.10.0
libtpu: 0.0.40
codegen_flags: <defaults>
</compile_context>

<pallas_src>
import numpy as np
import jax
import jax.numpy as jnp
from jax.experimental import pallas as pl
from jax.experimental.pallas import tpu as pltpu

# ---------------- model configuration (ComplEx, IVR regularization) ----------
MODEL_NAME = "ComplEx"
PARTS = 2
DIM = 32                       # full embedding dimension
D_PART = DIM // PARTS          # d
NUM_ENTITIES = 256
NUM_RELATIONS = 16
BATCH = 8
REGULARIZATION = "IVR"
ALPHA = 3.0
P_EXP = 2                      # self.p
Q_EXP = ALPHA / 2.0            # self.q  (== 1.5 here)

MAX_TILE_E = 2048              # entity tile cap (lane-aligned); Ne<=2048 -> 1 grid step

# ComplEx core tensor W: (P, P, P)
W_CORE = np.array([[[1.0, 0.0], [0.0, 1.0]],
                   [[0.0, 1.0], [-1.0, 0.0]]], dtype=np.float32)
W1n = W_CORE.reshape(PARTS, -1)                                   # W.view(P, P*P)
W2n = np.transpose(W_CORE, (1, 2, 0)).reshape(PARTS, -1)          # W.permute(1,2,0)
W3n = np.transpose(W_CORE, (2, 0, 1)).reshape(PARTS, -1)          # W.permute(2,0,1)


# ------------------------------ kernel ---------------------------------------
def kge_kernel(h_ref, r_ref, t_ref, ent_ref, scores_ref, norms_ref):
    P = PARTS
    PP = P * P
    B, PD = h_ref.shape
    d = PD // P

    h = h_ref[...]                              # (B, P*d) part-major
    r = r_ref[...]
    t = t_ref[...]

    hs = [h[:, k * d:(k + 1) * d] for k in range(P)]   # each (B, d)
    rs = [r[:, k * d:(k + 1) * d] for k in range(P)]
    ts = [t[:, k * d:(k + 1) * d] for k in range(P)]

    # |x|^2 summed over parts (p == 2)
    sh = sum(x * x for x in hs)
    sr = sum(x * x for x in rs)
    st = sum(x * x for x in ts)

    def pow_q(v):
        # v ** Q_EXP; specialize q = 1.5 as v * sqrt(v): one EUP op + one VPU
        # mul instead of exp(q*log(v)), and no log(0) edge (v >= 0 here).
        if Q_EXP == 1.5:
            return v * jnp.sqrt(v)
        return v ** Q_EXP

    def col(v):                                 # per-example sum over d -> (B, 1)
        return jnp.sum(v, axis=1, keepdims=True)

    h_norm = col(pow_q(sh))
    r_norm = col(pow_q(sr))
    t_norm = col(pow_q(st))
    hr_norm = col(pow_q(sh * sr))
    rt_norm = col(pow_q(sr * st))
    th_norm = col(pow_q(st * sh))

    def small_matmul(vecs, Wmat):
        # out[kk] = sum_i vecs[i] * Wmat[i, kk]  (unrolled, zeros skipped)
        outs = []
        for kk in range(PP):
            acc = None
            for i in range(P):
                w = float(Wmat[i, kk])
                if w == 0.0:
                    continue
                term = vecs[i] * w
                acc = term if acc is None else acc + term
            if acc is None:
                acc = jnp.zeros_like(vecs[0])
            outs.append(acc)
        return outs

    x1p = small_matmul(hs, W1n)   # h @ W1   -> list of PP (B, d) arrays
    x2p = small_matmul(rs, W2n)   # r @ W2
    x3p = small_matmul(ts, W3n)   # t @ W3

    def w_norm(xp):
        s = sum(x * x for x in xp)
        return col(pow_q(s * (1.0 / P)))

    wh_norm = w_norm(x1p)
    wr_norm = w_norm(x2p)
    wt_norm = w_norm(x3p)

    def second_matmul(vecs, xp):
        # out_k = sum_j vecs[j] * xp[j*P + k]
        return [sum(vecs[j] * xp[j * P + k] for j in range(P)) for k in range(P)]

    x1 = second_matmul(rs, x1p)   # list of P (B, d) arrays
    x2 = second_matmul(ts, x2p)
    x3 = second_matmul(hs, x3p)

    def wxy_norm(xk):
        s = sum(x * x for x in xk)
        return col(pow_q(s))

    whr_norm = wxy_norm(x1)
    wrt_norm = wxy_norm(x2)
    wth_norm = wxy_norm(x3)

    # Batch-mean reduced inside the kernel -> single lane-dense-ish (1, 12) row.
    norms = jnp.concatenate(
        [h_norm, r_norm, t_norm, hr_norm, rt_norm, th_norm,
         wh_norm, wr_norm, wt_norm, whr_norm, wrt_norm, wth_norm], axis=1)  # (B,12)
    norms_ref[...] = jnp.mean(norms, axis=0, keepdims=True)                 # (1,12)

    # Single fused MXU matmul: (B, P*d) @ (P*d, TILE_E).  x1 is assembled in the
    # same part-major layout as the pre-transformed entity table.
    x1_pm = jnp.concatenate(x1, axis=1)                                     # (B, P*d)
    scores_ref[...] = jnp.dot(x1_pm, ent_ref[...],
                              preferred_element_type=jnp.float32)


# ------------------------------ wrapper ---------------------------------------
def precompute_tables(entity_w, relation_w):
    """One-time (weight, not activation) layout transform to part-major."""
    Ne, D = entity_w.shape
    Nr = relation_w.shape[0]
    d, P = D // PARTS, PARTS
    # rows[e, k*d + j] = entity_w[e, j*P + k]
    ent_rows_pm = entity_w.reshape(Ne, d, P).transpose(0, 2, 1).reshape(Ne, P * d)
    ent_cols_pm = ent_rows_pm.T                         # (P*d, Ne) for the score matmul
    rel_rows_pm = relation_w.reshape(Nr, d, P).transpose(0, 2, 1).reshape(Nr, P * d)
    return ent_rows_pm, ent_cols_pm, rel_rows_pm


def forward_pallas(heads, relations, tails, ent_rows_pm, ent_cols_pm, rel_rows_pm):
    B = heads.shape[0]
    Ne, PD = ent_rows_pm.shape

    # embedding gathers (glue) — tables are already part-major, no per-call transpose
    h = jnp.take(ent_rows_pm, heads, axis=0)            # (B, P*d)
    r = jnp.take(rel_rows_pm, relations, axis=0)
    t = jnp.take(ent_rows_pm, tails, axis=0)

    tile_e = min(Ne, MAX_TILE_E)
    assert Ne % tile_e == 0
    grid = (Ne // tile_e,)

    # NOTE: the norms output block index is constant across the entity axis, so
    # the axis is marked "arbitrary".  At this size the grid is a single step;
    # for very large Ne on v7x, hoist the norms into a separate one-shot call
    # so the entity axis can be marked "parallel" across both TensorCores.
    scores, norms = pl.pallas_call(
        kge_kernel,
        out_shape=(jax.ShapeDtypeStruct((B, Ne), jnp.float32),
                   jax.ShapeDtypeStruct((1, 12), jnp.float32)),
        grid_spec=pltpu.PrefetchScalarGridSpec(
            num_scalar_prefetch=0,
            grid=grid,
            in_specs=[pl.BlockSpec((B, PD), lambda e: (0, 0)),
                      pl.BlockSpec((B, PD), lambda e: (0, 0)),
                      pl.BlockSpec((B, PD), lambda e: (0, 0)),
                      pl.BlockSpec((PD, tile_e), lambda e: (0, e))],
            out_specs=[pl.BlockSpec((B, tile_e), lambda e: (0, e)),
                       pl.BlockSpec((1, 12), lambda e: (0, 0))]),
        compiler_params=pltpu.CompilerParams(
            dimension_semantics=("arbitrary",)),
    )(h, r, t, ent_cols_pm)

    means = norms[0]                                    # (12,) batch-mean norms
    if REGULARIZATION == "IVR":
        factor1 = means[0] + means[1] + means[2]
        factor2 = means[3] + means[4] + means[5]
        factor3 = means[6] + means[7] + means[8]
        factor4 = means[9] + means[10] + means[11]
    elif REGULARIZATION in ("F2", "N3"):
        factor1 = means[0] + means[1] + means[2]
        factor2 = factor3 = factor4 = jnp.float32(0.0)
    elif REGULARIZATION == "DURA":
        factor1 = means[0] + means[2]
        factor2 = factor3 = jnp.float32(0.0)
        factor4 = means[9] + means[10]
    else:  # 'w/o'
        factor1 = factor2 = factor3 = factor4 = jnp.float32(0.0)
    return scores, factor1, factor2, factor3, factor4


# --------------------------- pure-JAX reference -------------------------------
def forward_ref(heads, relations, tails, entity_w, relation_w):
    P, D, d, q = PARTS, DIM, D_PART, Q_EXP
    W = jnp.asarray(W_CORE)
    h = jnp.take(entity_w, heads, axis=0).reshape(-1, d, P)
    r = jnp.take(relation_w, relations, axis=0).reshape(-1, d, P)
    t = jnp.take(entity_w, tails, axis=0).reshape(-1, d, P)

    sh = (jnp.abs(h) ** 2).sum(2); sr = (jnp.abs(r) ** 2).sum(2); st = (jnp.abs(t) ** 2).sum(2)
    h_norm = (sh ** q).sum(1); r_norm = (sr ** q).sum(1); t_norm = (st ** q).sum(1)
    hr_norm = ((sh * sr) ** q).sum(1); rt_norm = ((sr * st) ** q).sum(1); th_norm = ((st * sh) ** q).sum(1)

    x1 = jnp.matmul(h, W.reshape(P, -1))
    x2 = jnp.matmul(r, jnp.transpose(W, (1, 2, 0)).reshape(P, -1))
    x3 = jnp.matmul(t, jnp.transpose(W, (2, 0, 1)).reshape(P, -1))
    wh = (((jnp.abs(x1) ** 2).sum(2) / P) ** q).sum(1)
    wr = (((jnp.abs(x2) ** 2).sum(2) / P) ** q).sum(1)
    wt = (((jnp.abs(x3) ** 2).sum(2) / P) ** q).sum(1)

    x1 = jnp.einsum('bdj,bdjk->bdk', r, x1.reshape(-1, d, P, P))
    x2 = jnp.einsum('bdj,bdjk->bdk', t, x2.reshape(-1, d, P, P))
    x3 = jnp.einsum('bdj,bdjk->bdk', h, x3.reshape(-1, d, P, P))
    whr = ((jnp.abs(x1) ** 2).sum(2) ** q).sum(1)
    wrt = ((jnp.abs(x2) ** 2).sum(2) ** q).sum(1)
    wth = ((jnp.abs(x3) ** 2).sum(2) ** q).sum(1)

    scores = jnp.matmul(x1.reshape(-1, D), entity_w.T)
    f1 = jnp.mean(h_norm) + jnp.mean(r_norm) + jnp.mean(t_norm)
    f2 = jnp.mean(hr_norm) + jnp.mean(rt_norm) + jnp.mean(th_norm)
    f3 = jnp.mean(wh) + jnp.mean(wr) + jnp.mean(wt)
    f4 = jnp.mean(whr) + jnp.mean(wrt) + jnp.mean(wth)
    return scores, f1, f2, f3, f4


if __name__ == "__main__":
    key = jax.random.PRNGKey(0)
    k1, k2, k3, k4, k5 = jax.random.split(key, 5)

    bound = 0.01
    entity_w = jax.random.uniform(k1, (NUM_ENTITIES, DIM), jnp.float32, -bound, bound)
    relation_w = jax.random.uniform(k2, (NUM_RELATIONS, DIM), jnp.float32, -bound, bound)
    heads = jax.random.randint(k3, (BATCH,), 0, NUM_ENTITIES, jnp.int32)
    relations = jax.random.randint(k4, (BATCH,), 0, NUM_RELATIONS, jnp.int32)
    tails = jax.random.randint(k5, (BATCH,), 0, NUM_ENTITIES, jnp.int32)

    # One-time weight-layout transform (cached outside the per-call path).
    ent_rows_pm, ent_cols_pm, rel_rows_pm = jax.block_until_ready(
        precompute_tables(entity_w, relation_w))

    fwd = jax.jit(forward_pallas)
    out = fwd(heads, relations, tails, ent_rows_pm, ent_cols_pm, rel_rows_pm)
    out = jax.block_until_ready(out)

    ref = forward_ref(heads, relations, tails, entity_w, relation_w)
    np.testing.assert_allclose(np.asarray(out[0]), np.asarray(ref[0]), rtol=5e-3, atol=1e-8)
    for i in range(1, 5):
        np.testing.assert_allclose(float(out[i]), float(ref[i]), rtol=5e-3, atol=1e-9)

    print("KERNEL_OK")
</pallas_src>

<mosaic_0001>
module attributes {stable_mosaic.version = 11 : i64} {
  func.func @kge_kernel(%arg0: i32, %arg1: memref<8x32xf32, #tpu.memory_space<vmem>>, %arg2: memref<8x32xf32, #tpu.memory_space<vmem>>, %arg3: memref<8x32xf32, #tpu.memory_space<vmem>>, %arg4: memref<32x256xf32, #tpu.memory_space<vmem>>, %arg5: memref<8x256xf32, #tpu.memory_space<vmem>>, %arg6: memref<1x12xf32, #tpu.memory_space<vmem>>) attributes {dimension_semantics = [#tpu.dimension_semantics<arbitrary>], iteration_bounds = array<i64: 1>, scalar_prefetch = 0 : i64, scratch_operands = 0 : i64, tpu.core_type = #tpu.core_type<tc>, window_params = [{pipeline_mode = #tpu.pipeline_mode<synchronous>, transform_indices = @transform_0, window_bounds = array<i64: 8, 32>}, {pipeline_mode = #tpu.pipeline_mode<synchronous>, transform_indices = @transform_1, window_bounds = array<i64: 8, 32>}, {pipeline_mode = #tpu.pipeline_mode<synchronous>, transform_indices = @transform_2, window_bounds = array<i64: 8, 32>}, {transform_indices = @transform_3, window_bounds = array<i64: 32, 256>}, {transform_indices = @transform_4, window_bounds = array<i64: 8, 256>}, {pipeline_mode = #tpu.pipeline_mode<synchronous>, transform_indices = @transform_5, window_bounds = array<i64: 1, 12>}]} {
    %c0 = arith.constant 0 : index
    %c0_0 = arith.constant 0 : index
    %0 = vector.load %arg1[%c0, %c0_0] : memref<8x32xf32, #tpu.memory_space<vmem>>, vector<8x32xf32>
    %c0_1 = arith.constant 0 : index
    %c0_2 = arith.constant 0 : index
    %1 = vector.load %arg2[%c0_1, %c0_2] : memref<8x32xf32, #tpu.memory_space<vmem>>, vector<8x32xf32>
    %c0_3 = arith.constant 0 : index
    %c0_4 = arith.constant 0 : index
    %2 = vector.load %arg3[%c0_3, %c0_4] : memref<8x32xf32, #tpu.memory_space<vmem>>, vector<8x32xf32>
    %3 = vector.extract_strided_slice %0 {offsets = [0, 0], sizes = [8, 16], strides = [1, 1]} : vector<8x32xf32> to vector<8x16xf32>
    %4 = vector.extract_strided_slice %0 {offsets = [0, 16], sizes = [8, 16], strides = [1, 1]} : vector<8x32xf32> to vector<8x16xf32>
    %5 = vector.extract_strided_slice %1 {offsets = [0, 0], sizes = [8, 16], strides = [1, 1]} : vector<8x32xf32> to vector<8x16xf32>
    %6 = vector.extract_strided_slice %1 {offsets = [0, 16], sizes = [8, 16], strides = [1, 1]} : vector<8x32xf32> to vector<8x16xf32>
    %7 = vector.extract_strided_slice %2 {offsets = [0, 0], sizes = [8, 16], strides = [1, 1]} : vector<8x32xf32> to vector<8x16xf32>
    %8 = vector.extract_strided_slice %2 {offsets = [0, 16], sizes = [8, 16], strides = [1, 1]} : vector<8x32xf32> to vector<8x16xf32>
    %9 = arith.mulf %3, %3 : vector<8x16xf32>
    %cst = arith.constant 0.000000e+00 : f32
    %10 = vector.broadcast %cst : f32 to vector<8x16xf32>
    %11 = arith.addf %10, %9 : vector<8x16xf32>
    %12 = arith.mulf %4, %4 : vector<8x16xf32>
    %13 = arith.addf %11, %12 : vector<8x16xf32>
    %14 = arith.mulf %5, %5 : vector<8x16xf32>
    %cst_5 = arith.constant 0.000000e+00 : f32
    %15 = vector.broadcast %cst_5 : f32 to vector<8x16xf32>
    %16 = arith.addf %15, %14 : vector<8x16xf32>
    %17 = arith.mulf %6, %6 : vector<8x16xf32>
    %18 = arith.addf %16, %17 : vector<8x16xf32>
    %19 = arith.mulf %7, %7 : vector<8x16xf32>
    %cst_6 = arith.constant 0.000000e+00 : f32
    %20 = vector.broadcast %cst_6 : f32 to vector<8x16xf32>
    %21 = arith.addf %20, %19 : vector<8x16xf32>
    %22 = arith.mulf %8, %8 : vector<8x16xf32>
    %23 = arith.addf %21, %22 : vector<8x16xf32>
    %24 = math.sqrt %13 : vector<8x16xf32>
    %25 = arith.mulf %13, %24 : vector<8x16xf32>
    %cst_7 = arith.constant dense<0.000000e+00> : vector<8xf32>
    %26 = vector.multi_reduction <add>, %25, %cst_7 [1] : vector<8x16xf32> to vector<8xf32>
    %27 = vector.shape_cast %26 : vector<8xf32> to vector<8x1xf32>
    %28 = math.sqrt %18 : vector<8x16xf32>
    %29 = arith.mulf %18, %28 : vector<8x16xf32>
    %cst_8 = arith.constant dense<0.000000e+00> : vector<8xf32>
    %30 = vector.multi_reduction <add>, %29, %cst_8 [1] : vector<8x16xf32> to vector<8xf32>
    %31 = vector.shape_cast %30 : vector<8xf32> to vector<8x1xf32>
    %32 = math.sqrt %23 : vector<8x16xf32>
    %33 = arith.mulf %23, %32 : vector<8x16xf32>
    %cst_9 = arith.constant dense<0.000000e+00> : vector<8xf32>
    %34 = vector.multi_reduction <add>, %33, %cst_9 [1] : vector<8x16xf32> to vector<8xf32>
    %35 = vector.shape_cast %34 : vector<8xf32> to vector<8x1xf32>
    %36 = arith.mulf %13, %18 : vector<8x16xf32>
    %37 = math.sqrt %36 : vector<8x16xf32>
    %38 = arith.mulf %36, %37 : vector<8x16xf32>
    %cst_10 = arith.constant dense<0.000000e+00> : vector<8xf32>
    %39 = vector.multi_reduction <add>, %38, %cst_10 [1] : vector<8x16xf32> to vector<8xf32>
    %40 = vector.shape_cast %39 : vector<8xf32> to vector<8x1xf32>
    %41 = arith.mulf %18, %23 : vector<8x16xf32>
    %42 = math.sqrt %41 : vector<8x16xf32>
    %43 = arith.mulf %41, %42 : vector<8x16xf32>
    %cst_11 = arith.constant dense<0.000000e+00> : vector<8xf32>
    %44 = vector.multi_reduction <add>, %43, %cst_11 [1] : vector<8x16xf32> to vector<8xf32>
    %45 = vector.shape_cast %44 : vector<8xf32> to vector<8x1xf32>
    %46 = arith.mulf %23, %13 : vector<8x16xf32>
    %47 = math.sqrt %46 : vector<8x16xf32>
    %48 = arith.mulf %46, %47 : vector<8x16xf32>
    %cst_12 = arith.constant dense<0.000000e+00> : vector<8xf32>
    %49 = vector.multi_reduction <add>, %48, %cst_12 [1] : vector<8x16xf32> to vector<8xf32>
    %50 = vector.shape_cast %49 : vector<8xf32> to vector<8x1xf32>
    %cst_13 = arith.constant 1.000000e+00 : f32
    %51 = vector.broadcast %cst_13 : f32 to vector<8x16xf32>
    %52 = arith.mulf %3, %51 : vector<8x16xf32>
    %cst_14 = arith.constant 1.000000e+00 : f32
    %53 = vector.broadcast %cst_14 : f32 to vector<8x16xf32>
    %54 = arith.mulf %4, %53 : vector<8x16xf32>
    %cst_15 = arith.constant -1.000000e+00 : f32
    %55 = vector.broadcast %cst_15 : f32 to vector<8x16xf32>
    %56 = arith.mulf %4, %55 : vector<8x16xf32>
    %cst_16 = arith.constant 1.000000e+00 : f32
    %57 = vector.broadcast %cst_16 : f32 to vector<8x16xf32>
    %58 = arith.mulf %3, %57 : vector<8x16xf32>
    %cst_17 = arith.constant 1.000000e+00 : f32
    %59 = vector.broadcast %cst_17 : f32 to vector<8x16xf32>
    %60 = arith.mulf %5, %59 : vector<8x16xf32>
    %cst_18 = arith.constant -1.000000e+00 : f32
    %61 = vector.broadcast %cst_18 : f32 to vector<8x16xf32>
    %62 = arith.mulf %6, %61 : vector<8x16xf32>
    %cst_19 = arith.constant 1.000000e+00 : f32
    %63 = vector.broadcast %cst_19 : f32 to vector<8x16xf32>
    %64 = arith.mulf %6, %63 : vector<8x16xf32>
    %cst_20 = arith.constant 1.000000e+00 : f32
    %65 = vector.broadcast %cst_20 : f32 to vector<8x16xf32>
    %66 = arith.mulf %5, %65 : vector<8x16xf32>
    %cst_21 = arith.constant 1.000000e+00 : f32
    %67 = vector.broadcast %cst_21 : f32 to vector<8x16xf32>
    %68 = arith.mulf %7, %67 : vector<8x16xf32>
    %cst_22 = arith.constant 1.000000e+00 : f32
    %69 = vector.broadcast %cst_22 : f32 to vector<8x16xf32>
    %70 = arith.mulf %8, %69 : vector<8x16xf32>
    %cst_23 = arith.constant 1.000000e+00 : f32
    %71 = vector.broadcast %cst_23 : f32 to vector<8x16xf32>
    %72 = arith.mulf %8, %71 : vector<8x16xf32>
    %cst_24 = arith.constant -1.000000e+00 : f32
    %73 = vector.broadcast %cst_24 : f32 to vector<8x16xf32>
    %74 = arith.mulf %7, %73 : vector<8x16xf32>
    %75 = arith.mulf %52, %52 : vector<8x16xf32>
    %cst_25 = arith.constant 0.000000e+00 : f32
    %76 = vector.broadcast %cst_25 : f32 to vector<8x16xf32>
    %77 = arith.addf %76, %75 : vector<8x16xf32>
    %78 = arith.mulf %54, %54 : vector<8x16xf32>
    %79 = arith.addf %77, %78 : vector<8x16xf32>
    %80 = arith.mulf %56, %56 : vector<8x16xf32>
    %81 = arith.addf %79, %80 : vector<8x16xf32>
    %82 = arith.mulf %58, %58 : vector<8x16xf32>
    %83 = arith.addf %81, %82 : vector<8x16xf32>
    %cst_26 = arith.constant 5.000000e-01 : f32
    %84 = vector.broadcast %cst_26 : f32 to vector<8x16xf32>
    %85 = arith.mulf %83, %84 : vector<8x16xf32>
    %86 = math.sqrt %85 : vector<8x16xf32>
    %87 = arith.mulf %85, %86 : vector<8x16xf32>
    %cst_27 = arith.constant dense<0.000000e+00> : vector<8xf32>
    %88 = vector.multi_reduction <add>, %87, %cst_27 [1] : vector<8x16xf32> to vector<8xf32>
    %89 = vector.shape_cast %88 : vector<8xf32> to vector<8x1xf32>
    %90 = arith.mulf %60, %60 : vector<8x16xf32>
    %cst_28 = arith.constant 0.000000e+00 : f32
    %91 = vector.broadcast %cst_28 : f32 to vector<8x16xf32>
    %92 = arith.addf %91, %90 : vector<8x16xf32>
    %93 = arith.mulf %62, %62 : vector<8x16xf32>
    %94 = arith.addf %92, %93 : vector<8x16xf32>
    %95 = arith.mulf %64, %64 : vector<8x16xf32>
    %96 = arith.addf %94, %95 : vector<8x16xf32>
    %97 = arith.mulf %66, %66 : vector<8x16xf32>
    %98 = arith.addf %96, %97 : vector<8x16xf32>
    %cst_29 = arith.constant 5.000000e-01 : f32
    %99 = vector.broadcast %cst_29 : f32 to vector<8x16xf32>
    %100 = arith.mulf %98, %99 : vector<8x16xf32>
    %101 = math.sqrt %100 : vector<8x16xf32>
    %102 = arith.mulf %100, %101 : vector<8x16xf32>
    %cst_30 = arith.constant dense<0.000000e+00> : vector<8xf32>
    %103 = vector.multi_reduction <add>, %102, %cst_30 [1] : vector<8x16xf32> to vector<8xf32>
    %104 = vector.shape_cast %103 : vector<8xf32> to vector<8x1xf32>
    %105 = arith.mulf %68, %68 : vector<8x16xf32>
    %cst_31 = arith.constant 0.000000e+00 : f32
    %106 = vector.broadcast %cst_31 : f32 to vector<8x16xf32>
    %107 = arith.addf %106, %105 : vector<8x16xf32>
    %108 = arith.mulf %70, %70 : vector<8x16xf32>
    %109 = arith.addf %107, %108 : vector<8x16xf32>
    %110 = arith.mulf %72, %72 : vector<8x16xf32>
    %111 = arith.addf %109, %110 : vector<8x16xf32>
    %112 = arith.mulf %74, %74 : vector<8x16xf32>
    %113 = arith.addf %111, %112 : vector<8x16xf32>
    %cst_32 = arith.constant 5.000000e-01 : f32
    %114 = vector.broadcast %cst_32 : f32 to vector<8x16xf32>
    %115 = arith.mulf %113, %114 : vector<8x16xf32>
    %116 = math.sqrt %115 : vector<8x16xf32>
    %117 = arith.mulf %115, %116 : vector<8x16xf32>
    %cst_33 = arith.constant dense<0.000000e+00> : vector<8xf32>
    %118 = vector.multi_reduction <add>, %117, %cst_33 [1] : vector<8x16xf32> to vector<8xf32>
    %119 = vector.shape_cast %118 : vector<8xf32> to vector<8x1xf32>
    %120 = arith.mulf %5, %52 : vector<8x16xf32>
    %cst_34 = arith.constant 0.000000e+00 : f32
    %121 = vector.broadcast %cst_34 : f32 to vector<8x16xf32>
    %122 = arith.addf %121, %120 : vector<8x16xf32>
    %123 = arith.mulf %6, %56 : vector<8x16xf32>
    %124 = arith.addf %122, %123 : vector<8x16xf32>
    %125 = arith.mulf %5, %54 : vector<8x16xf32>
    %cst_35 = arith.constant 0.000000e+00 : f32
    %126 = vector.broadcast %cst_35 : f32 to vector<8x16xf32>
    %127 = arith.addf %126, %125 : vector<8x16xf32>
    %128 = arith.mulf %6, %58 : vector<8x16xf32>
    %129 = arith.addf %127, %128 : vector<8x16xf32>
    %130 = arith.mulf %7, %60 : vector<8x16xf32>
    %cst_36 = arith.constant 0.000000e+00 : f32
    %131 = vector.broadcast %cst_36 : f32 to vector<8x16xf32>
    %132 = arith.addf %131, %130 : vector<8x16xf32>
    %133 = arith.mulf %8, %64 : vector<8x16xf32>
    %134 = arith.addf %132, %133 : vector<8x16xf32>
    %135 = arith.mulf %7, %62 : vector<8x16xf32>
    %cst_37 = arith.constant 0.000000e+00 : f32
    %136 = vector.broadcast %cst_37 : f32 to vector<8x16xf32>
    %137 = arith.addf %136, %135 : vector<8x16xf32>
    %138 = arith.mulf %8, %66 : vector<8x16xf32>
    %139 = arith.addf %137, %138 : vector<8x16xf32>
    %140 = arith.mulf %3, %68 : vector<8x16xf32>
    %cst_38 = arith.constant 0.000000e+00 : f32
    %141 = vector.broadcast %cst_38 : f32 to vector<8x16xf32>
    %142 = arith.addf %141, %140 : vector<8x16xf32>
    %143 = arith.mulf %4, %72 : vector<8x16xf32>
    %144 = arith.addf %142, %143 : vector<8x16xf32>
    %145 = arith.mulf %3, %70 : vector<8x16xf32>
    %cst_39 = arith.constant 0.000000e+00 : f32
    %146 = vector.broadcast %cst_39 : f32 to vector<8x16xf32>
    %147 = arith.addf %146, %145 : vector<8x16xf32>
    %148 = arith.mulf %4, %74 : vector<8x16xf32>
    %149 = arith.addf %147, %148 : vector<8x16xf32>
    %150 = arith.mulf %124, %124 : vector<8x16xf32>
    %cst_40 = arith.constant 0.000000e+00 : f32
    %151 = vector.broadcast %cst_40 : f32 to vector<8x16xf32>
    %152 = arith.addf %151, %150 : vector<8x16xf32>
    %153 = arith.mulf %129, %129 : vector<8x16xf32>
    %154 = arith.addf %152, %153 : vector<8x16xf32>
    %155 = math.sqrt %154 : vector<8x16xf32>
    %156 = arith.mulf %154, %155 : vector<8x16xf32>
    %cst_41 = arith.constant dense<0.000000e+00> : vector<8xf32>
    %157 = vector.multi_reduction <add>, %156, %cst_41 [1] : vector<8x16xf32> to vector<8xf32>
    %158 = vector.shape_cast %157 : vector<8xf32> to vector<8x1xf32>
    %159 = arith.mulf %134, %134 : vector<8x16xf32>
    %cst_42 = arith.constant 0.000000e+00 : f32
    %160 = vector.broadcast %cst_42 : f32 to vector<8x16xf32>
    %161 = arith.addf %160, %159 : vector<8x16xf32>
    %162 = arith.mulf %139, %139 : vector<8x16xf32>
    %163 = arith.addf %161, %162 : vector<8x16xf32>
    %164 = math.sqrt %163 : vector<8x16xf32>
    %165 = arith.mulf %163, %164 : vector<8x16xf32>
    %cst_43 = arith.constant dense<0.000000e+00> : vector<8xf32>
    %166 = vector.multi_reduction <add>, %165, %cst_43 [1] : vector<8x16xf32> to vector<8xf32>
    %167 = vector.shape_cast %166 : vector<8xf32> to vector<8x1xf32>
    %168 = arith.mulf %144, %144 : vector<8x16xf32>
    %cst_44 = arith.constant 0.000000e+00 : f32
    %169 = vector.broadcast %cst_44 : f32 to vector<8x16xf32>
    %170 = arith.addf %169, %168 : vector<8x16xf32>
    %171 = arith.mulf %149, %149 : vector<8x16xf32>
    %172 = arith.addf %170, %171 : vector<8x16xf32>
    %173 = math.sqrt %172 : vector<8x16xf32>
    %174 = arith.mulf %172, %173 : vector<8x16xf32>
    %cst_45 = arith.constant dense<0.000000e+00> : vector<8xf32>
    %175 = vector.multi_reduction <add>, %174, %cst_45 [1] : vector<8x16xf32> to vector<8xf32>
    %176 = vector.shape_cast %175 : vector<8xf32> to vector<8x1xf32>
    %177 = tpu.concatenate %27, %31, %35, %40, %45, %50, %89, %104, %119, %158, %167, %176 in 1 : vector<8x1xf32>, vector<8x1xf32>, vector<8x1xf32>, vector<8x1xf32>, vector<8x1xf32>, vector<8x1xf32>, vector<8x1xf32>, vector<8x1xf32>, vector<8x1xf32>, vector<8x1xf32>, vector<8x1xf32>, vector<8x1xf32> -> vector<8x12xf32>
    %cst_46 = arith.constant dense<0.000000e+00> : vector<12xf32>
    %178 = vector.multi_reduction <add>, %177, %cst_46 [0] : vector<8x12xf32> to vector<12xf32>
    %179 = vector.shape_cast %178 : vector<12xf32> to vector<1x12xf32>
    %cst_47 = arith.constant 8.000000e+00 : f32
    %180 = vector.broadcast %cst_47 : f32 to vector<1x12xf32>
    %181 = arith.divf %179, %180 : vector<1x12xf32>
    %c0_48 = arith.constant 0 : index
    %c0_49 = arith.constant 0 : index
    %182 = vector.load %arg6[%c0_48, %c0_49] : memref<1x12xf32, #tpu.memory_space<vmem>>, vector<1x12xf32>
    tpu.vector_store %arg6[%c0_48, %c0_49], %181 {strides = array<i32>} : memref<1x12xf32, #tpu.memory_space<vmem>>, vector<1x12xf32>,
    %183 = tpu.concatenate %124, %129 in 1 : vector<8x16xf32>, vector<8x16xf32> -> vector<8x32xf32>
    %c0_50 = arith.constant 0 : index
    %c0_51 = arith.constant 0 : index
    %184 = vector.load %arg4[%c0_50, %c0_51] : memref<32x256xf32, #tpu.memory_space<vmem>>, vector<32x256xf32>
    %cst_52 = arith.constant dense<0.000000e+00> : vector<8x256xf32>
    %185 = tpu.matmul %183, %184, %cst_52 {dimension_numbers = #tpu.dot_dimension_numbers<[1], [0], [0], [1], [0, 0, 1, 1], [], []>} : vector<8x32xf32>, vector<32x256xf32>, vector<8x256xf32> -> vector<8x256xf32>
    %c0_53 = arith.constant 0 : index
    %c0_54 = arith.constant 0 : index
    %186 = vector.load %arg5[%c0_53, %c0_54] : memref<8x256xf32, #tpu.memory_space<vmem>>, vector<8x256xf32>
    tpu.vector_store %arg5[%c0_53, %c0_54], %185 {strides = array<i32>} : memref<8x256xf32, #tpu.memory_space<vmem>>, vector<8x256xf32>,
    return
  }
  func.func @transform_0(%arg0: i32) -> (i32, i32) {
    %c0_i32 = arith.constant 0 : i32
    %c0_i32_0 = arith.constant 0 : i32
    %c0_i32_1 = arith.constant 0 : i32
    return %c0_i32, %c0_i32_0 : i32, i32
  }
  func.func @transform_1(%arg0: i32) -> (i32, i32) {
    %c0_i32 = arith.constant 0 : i32
    %c0_i32_0 = arith.constant 0 : i32
    %c0_i32_1 = arith.constant 0 : i32
    return %c0_i32, %c0_i32_0 : i32, i32
  }
  func.func @transform_2(%arg0: i32) -> (i32, i32) {
    %c0_i32 = arith.constant 0 : i32
    %c0_i32_0 = arith.constant 0 : i32
    %c0_i32_1 = arith.constant 0 : i32
    return %c0_i32, %c0_i32_0 : i32, i32
  }
  func.func @transform_3(%arg0: i32) -> (i32, i32) {
    %c0_i32 = arith.constant 0 : i32
    %c0_i32_0 = arith.constant 0 : i32
    return %c0_i32, %arg0 : i32, i32
  }
  func.func @transform_4(%arg0: i32) -> (i32, i32) {
    %c0_i32 = arith.constant 0 : i32
    %c0_i32_0 = arith.constant 0 : i32
    return %c0_i32, %arg0 : i32, i32
  }
  func.func @transform_5(%arg0: i32) -> (i32, i32) {
    %c0_i32 = arith.constant 0 : i32
    %c0_i32_0 = arith.constant 0 : i32
    %c0_i32_1 = arith.constant 0 : i32
    return %c0_i32, %c0_i32_0 : i32, i32
  }
}

</mosaic_0001>

<llo_original>
// kernel: forward_pallas.1
$region0: #{forward_pallas.1}
  #allocation0 [shape = 'u32[]', space=smem, size = 0x4, offset = 0x4, fixed_abs, tag = 'smem constant byte address 0x4 - core index']
  #allocation1 [shape = 'u32[144,128]{1,0:T(1,128)}', space=vmem, size = 0x12000, scoped, tag = 'internal scratch']
  %s0 = inlined_call_operand.vmem [shape: f32[8,32], index: 0, kind: input, shape index: {}]
  %s1 = inlined_call_operand.vmem [shape: f32[8,32], index: 1, kind: input, shape index: {}]
  %s2 = inlined_call_operand.vmem [shape: f32[8,32], index: 2, kind: input, shape index: {}]
  %s3 = inlined_call_operand.vmem [shape: f32[32,256], index: 3, kind: input, shape index: {}]
  %s4 = inlined_call_operand.hbm [shape: f32[8,256], index: 4, kind: output, shape index: {0}]
  %s5 = inlined_call_operand.vmem [shape: f32[1,12], index: 5, kind: output, shape index: {1}]
  %6 = xla_tuple %s4, %s5
  %s7 = sld [smem:[#allocation0]]
  $region34: #{forward_pallas.1} parent=0
    _
  %s9 = ssub.s32 1, %s7
  %s10 = scalar_select 0, %s9, %s7
  $region1: #{forward_pallas.1} parent=0
    #allocation2 [shape = 'u8[8192]{0}', space=vmem, size = 0x2000, scoped, tag = 'output window, operand 0, single buffered']
    #allocation3 [shape = 's32[1]{0}', space=sflag, size = 0x4, scoped, tag = 'scoped memory for forward_pallas.1']
    %11 = vsyncpa [#allocation3], 0
    // Predicated region
    $region2: #{forward_pallas.1} parent=1 // pred_check
      _
    $region3: #{forward_pallas.1} parent=1 // pred_check_branch
      %13 = sbr.rel (0) target = $region5
    $region4: #{forward_pallas.1} parent=1 // pred_region
      _
    $region5: #{forward_pallas.1} parent=1 // pred_fallthru
      _
    // Predicated region
    $region6: #{forward_pallas.1} parent=1 // pred_check
      _
    $region7: #{forward_pallas.1} parent=1 // pred_check_branch
      %15 = sbr.rel (0) target = $region9
    $region8: #{forward_pallas.1} parent=1 // pred_region
      _
    $region9: #{forward_pallas.1} parent=1 // pred_fallthru
      _
    // Predicated region
    $region10: #{forward_pallas.1} parent=1 // pred_check
      _
    $region11: #{forward_pallas.1} parent=1 // pred_check_branch
      %17 = sbr.rel (0) target = $region13
    $region12: #{forward_pallas.1} parent=1 // pred_region
      _
    $region13: #{forward_pallas.1} parent=1 // pred_fallthru
      _
    // Predicated region
    $region14: #{forward_pallas.1} parent=1 // pred_check
      _
    $region15: #{forward_pallas.1} parent=1 // pred_check_branch
      %19 = sbr.rel (0) target = $region17
    $region16: #{forward_pallas.1} parent=1 // pred_region
      _
    $region17: #{forward_pallas.1} parent=1 // pred_fallthru
      _
    %v20 = vld [vmem:[%s0] sm:$0xff]
    %v21 = vld [vmem:[%s1] sm:$0xff]
    %v22 = vld [vmem:[%s2] sm:$0xff]
    %v23 = vmul.f32 %v20, %v20
    %v24 = vadd.f32 %v23, 0.0
    %26 = vrot.lane.b32.xlu0 %v23, 112
    %v27 = vpop.permute.xlu0 %26
    %v29 = vadd.f32 %v24, %v27
    %v30 = vmul.f32 %v21, %v21
    %v31 = vadd.f32 %v30, 0.0
    %33 = vrot.lane.b32.xlu0 %v30, 112
    %v34 = vpop.permute.xlu0 %33
    %v36 = vadd.f32 %v31, %v34
    %v37 = vmul.f32 %v22, %v22
    %v38 = vadd.f32 %v37, 0.0
    %40 = vrot.lane.b32.xlu0 %v37, 112
    %v41 = vpop.permute.xlu0 %40
    %v43 = vadd.f32 %v38, %v41
    %v44 = vrsqrt.pop %v29
    %v45 = vmul.f32 %v29, %v44
    %vm46 = vcmp.eq.f32.partialorder %v29, inf
    %v47 = vsel %vm46, %v29, %v45
    %vm48 = vcmp.eq.f32.partialorder %v29, 0.0
    %v49 = vand.u32 %v29, 2147483648
    %v50 = vsel %vm48, %v49, %v47
    %v51 = vmul.f32 %v29, %v50
    %vm52 = vcmask 130048
    %v53 = vsel %vm52, %v51, 0.0
    %54 = vadd.xlane.f32.xlu0 %v53
    %v55 = vpop.xlane.xlu0 %54
    %v56 = vrsqrt.pop %v36
    %v57 = vmul.f32 %v36, %v56
    %vm58 = vcmp.eq.f32.partialorder %v36, inf
    %v59 = vsel %vm58, %v36, %v57
    %vm60 = vcmp.eq.f32.partialorder %v36, 0.0
    %v61 = vand.u32 %v36, 2147483648
    %v62 = vsel %vm60, %v61, %v59
    %v63 = vmul.f32 %v36, %v62
    %v64 = vsel %vm52, %v63, 0.0
    %65 = vadd.xlane.f32.xlu0 %v64
    %v66 = vpop.xlane.xlu0 %65
    %v67 = vrsqrt.pop %v43
    %v68 = vmul.f32 %v43, %v67
    %vm69 = vcmp.eq.f32.partialorder %v43, inf
    %v70 = vsel %vm69, %v43, %v68
    %vm71 = vcmp.eq.f32.partialorder %v43, 0.0
    %v72 = vand.u32 %v43, 2147483648
    %v73 = vsel %vm71, %v72, %v70
    %v74 = vmul.f32 %v43, %v73
    %v75 = vsel %vm52, %v74, 0.0
    %76 = vadd.xlane.f32.xlu0 %v75
    %v77 = vpop.xlane.xlu0 %76
    %v78 = vmul.f32 %v29, %v36
    %v79 = vrsqrt.pop %v78
    %v80 = vmul.f32 %v78, %v79
    %vm81 = vcmp.eq.f32.partialorder %v78, inf
    %v82 = vsel %vm81, %v78, %v80
    %vm83 = vcmp.eq.f32.partialorder %v78, 0.0
    %v84 = vand.u32 %v78, 2147483648
    %v85 = vsel %vm83, %v84, %v82
    %v86 = vmul.f32 %v78, %v85
    %v87 = vsel %vm52, %v86, 0.0
    %88 = vadd.xlane.f32.xlu0 %v87
    %v89 = vpop.xlane.xlu0 %88
    %v90 = vmul.f32 %v36, %v43
    %v91 = vrsqrt.pop %v90
    %v92 = vmul.f32 %v90, %v91
    %vm93 = vcmp.eq.f32.partialorder %v90, inf
    %v94 = vsel %vm93, %v90, %v92
    %vm95 = vcmp.eq.f32.partialorder %v90, 0.0
    %v96 = vand.u32 %v90, 2147483648
    %v97 = vsel %vm95, %v96, %v94
    %v98 = vmul.f32 %v90, %v97
    %v99 = vsel %vm52, %v98, 0.0
    %100 = vadd.xlane.f32.xlu0 %v99
    %v101 = vpop.xlane.xlu0 %100
    %v102 = vmul.f32 %v43, %v29
    %v103 = vrsqrt.pop %v102
    %v104 = vmul.f32 %v102, %v103
    %vm105 = vcmp.eq.f32.partialorder %v102, inf
    %v106 = vsel %vm105, %v102, %v104
    %vm107 = vcmp.eq.f32.partialorder %v102, 0.0
    %v108 = vand.u32 %v102, 2147483648
    %v109 = vsel %vm107, %v108, %v106
    %v110 = vmul.f32 %v102, %v109
    %v111 = vsel %vm52, %v110, 0.0
    %112 = vadd.xlane.f32.xlu0 %v111
    %v113 = vpop.xlane.xlu0 %112
    %v114 = vmul.f32 %v20, -1.0
    %v115 = vmul.f32 %v21, -1.0
    %v116 = vmul.f32 %v22, -1.0
    %v117 = vmul.f32 %v114, %v114
    %119 = vrot.lane.b32.xlu0 %v117, 112
    %v120 = vpop.permute.xlu0 %119
    %v122 = vadd.f32 %v29, %v120
    %v123 = vadd.f32 %v122, %v23
    %v124 = vmul.f32 %v123, 0.5
    %v125 = vrsqrt.pop %v124
    %v126 = vmul.f32 %v124, %v125
    %vm127 = vcmp.eq.f32.partialorder %v124, inf
    %v128 = vsel %vm127, %v124, %v126
    %vm129 = vcmp.eq.f32.partialorder %v124, 0.0
    %v130 = vand.u32 %v124, 2147483648
    %v131 = vsel %vm129, %v130, %v128
    %v132 = vmul.f32 %v124, %v131
    %v133 = vsel %vm52, %v132, 0.0
    %134 = vadd.xlane.f32.xlu0 %v133
    %v135 = vpop.xlane.xlu0 %134
    %v136 = vmul.f32 %v115, %v115
    %138 = vrot.lane.b32.xlu0 %v136, 112
    %v139 = vpop.permute.xlu0 %138
    %v141 = vadd.f32 %v31, %v139
    %v142 = vadd.f32 %v141, %v34
    %v143 = vadd.f32 %v142, %v30
    %v144 = vmul.f32 %v143, 0.5
    %v145 = vrsqrt.pop %v144
    %v146 = vmul.f32 %v144, %v145
    %vm147 = vcmp.eq.f32.partialorder %v144, inf
    %v148 = vsel %vm147, %v144, %v146
    %vm149 = vcmp.eq.f32.partialorder %v144, 0.0
    %v150 = vand.u32 %v144, 2147483648
    %v151 = vsel %vm149, %v150, %v148
    %v152 = vmul.f32 %v144, %v151
    %v153 = vsel %vm52, %v152, 0.0
    %154 = vadd.xlane.f32.xlu0 %v153
    %v155 = vpop.xlane.xlu0 %154
    %v156 = vadd.f32 %v43, %v41
    %v157 = vmul.f32 %v116, %v116
    %v158 = vadd.f32 %v156, %v157
    %v159 = vmul.f32 %v158, 0.5
    %v160 = vrsqrt.pop %v159
    %v161 = vmul.f32 %v159, %v160
    %vm162 = vcmp.eq.f32.partialorder %v159, inf
    %v163 = vsel %vm162, %v159, %v161
    %vm164 = vcmp.eq.f32.partialorder %v159, 0.0
    %v165 = vand.u32 %v159, 2147483648
    %v166 = vsel %vm164, %v165, %v163
    %v167 = vmul.f32 %v159, %v166
    %v168 = vsel %vm52, %v167, 0.0
    %169 = vadd.xlane.f32.xlu0 %v168
    %v170 = vpop.xlane.xlu0 %169
    %v171 = vmul.f32 %v21, %v20
    %v172 = vadd.f32 %v171, 0.0
    %v173 = vmul.f32 %v21, %v114
    %175 = vrot.lane.b32.xlu0 %v173, 112
    %v176 = vpop.permute.xlu0 %175
    %v178 = vadd.f32 %v172, %v176
    %180 = vrot.lane.b32.xlu0 %v20, 112
    %v181 = vpop.permute.xlu0 %180
    %v183 = vmul.f32 %v21, %v181
    %v184 = vadd.f32 %v183, 0.0
    %185 = vrot.lane.b32.xlu0 %v20, 16
    %v186 = vpop.permute.xlu0 %185
    %v188 = vmul.f32 %v21, %v186
    %190 = vrot.lane.b32.xlu0 %v188, 112
    %v191 = vpop.permute.xlu0 %190
    %v193 = vadd.f32 %v184, %v191
    %v194 = vmul.f32 %v22, %v21
    %v195 = vadd.f32 %v194, 0.0
    %197 = vrot.lane.b32.xlu0 %v194, 112
    %v198 = vpop.permute.xlu0 %197
    %v200 = vadd.f32 %v195, %v198
    %202 = vrot.lane.b32.xlu0 %v115, 112
    %v203 = vpop.permute.xlu0 %202
    %v205 = vmul.f32 %v22, %v203
    %v206 = vadd.f32 %v205, 0.0
    %208 = vrot.lane.b32.xlu0 %v21, 16
    %v209 = vpop.permute.xlu0 %208
    %v211 = vmul.f32 %v22, %v209
    %213 = vrot.lane.b32.xlu0 %v211, 112
    %v214 = vpop.permute.xlu0 %213
    %v216 = vadd.f32 %v206, %v214
    %v217 = vmul.f32 %v20, %v22
    %v218 = vadd.f32 %v217, 0.0
    %220 = vrot.lane.b32.xlu0 %v217, 112
    %v221 = vpop.permute.xlu0 %220
    %v223 = vadd.f32 %v218, %v221
    %225 = vrot.lane.b32.xlu0 %v22, 112
    %v226 = vpop.permute.xlu0 %225
    %v228 = vmul.f32 %v20, %v226
    %v229 = vadd.f32 %v228, 0.0
    %231 = vrot.lane.b32.xlu0 %v116, 16
    %v232 = vpop.permute.xlu0 %231
    %v234 = vmul.f32 %v20, %v232
    %236 = vrot.lane.b32.xlu0 %v234, 112
    %v237 = vpop.permute.xlu0 %236
    %v239 = vadd.f32 %v229, %v237
    %v240 = vmul.f32 %v178, %v178
    %v241 = vadd.f32 %v240, 0.0
    %v242 = vmul.f32 %v193, %v193
    %v243 = vadd.f32 %v241, %v242
    %v244 = vrsqrt.pop %v243
    %v245 = vmul.f32 %v243, %v244
    %vm246 = vcmp.eq.f32.partialorder %v243, inf
    %v247 = vsel %vm246, %v243, %v245
    %vm248 = vcmp.eq.f32.partialorder %v243, 0.0
    %v249 = vand.u32 %v243, 2147483648
    %v250 = vsel %vm248, %v249, %v247
    %v251 = vmul.f32 %v243, %v250
    %v252 = vsel %vm52, %v251, 0.0
    %253 = vadd.xlane.f32.xlu0 %v252
    %v254 = vpop.xlane.xlu0 %253
    %v255 = vmul.f32 %v200, %v200
    %v256 = vadd.f32 %v255, 0.0
    %v257 = vmul.f32 %v216, %v216
    %v258 = vadd.f32 %v256, %v257
    %v259 = vrsqrt.pop %v258
    %v260 = vmul.f32 %v258, %v259
    %vm261 = vcmp.eq.f32.partialorder %v258, inf
    %v262 = vsel %vm261, %v258, %v260
    %vm263 = vcmp.eq.f32.partialorder %v258, 0.0
    %v264 = vand.u32 %v258, 2147483648
    %v265 = vsel %vm263, %v264, %v262
    %v266 = vmul.f32 %v258, %v265
    %v267 = vsel %vm52, %v266, 0.0
    %268 = vadd.xlane.f32.xlu0 %v267
    %v269 = vpop.xlane.xlu0 %268
    %v270 = vmul.f32 %v223, %v223
    %v271 = vadd.f32 %v270, 0.0
    %v272 = vmul.f32 %v239, %v239
    %v273 = vadd.f32 %v271, %v272
    %v274 = vrsqrt.pop %v273
    %v275 = vmul.f32 %v273, %v274
    %vm276 = vcmp.eq.f32.partialorder %v273, inf
    %v277 = vsel %vm276, %v273, %v275
    %vm278 = vcmp.eq.f32.partialorder %v273, 0.0
    %v279 = vand.u32 %v273, 2147483648
    %v280 = vsel %vm278, %v279, %v277
    %v281 = vmul.f32 %v273, %v280
    %v282 = vsel %vm52, %v281, 0.0
    %283 = vadd.xlane.f32.xlu0 %v282
    %v284 = vpop.xlane.xlu0 %283
    %vm285 = vcmask 7168
    %v286 = vsel %vm285, %v55, %v66
    %vm287 = vcmask 15360
    %v288 = vsel %vm287, %v286, %v77
    %vm289 = vcmask 23552
    %v290 = vsel %vm289, %v288, %v89
    %vm291 = vcmask 31744
    %v292 = vsel %vm291, %v290, %v101
    %vm293 = vcmask 39936
    %v294 = vsel %vm293, %v292, %v113
    %vm295 = vcmask 48128
    %v296 = vsel %vm295, %v294, %v135
    %vm297 = vcmask 56320
    %v298 = vsel %vm297, %v296, %v155
    %vm299 = vcmask 64512
    %v300 = vsel %vm299, %v298, %v170
    %vm301 = vcmask 72704
    %v302 = vsel %vm301, %v300, %v254
    %vm303 = vcmask 80896
    %v304 = vsel %vm303, %v302, %v269
    %vm305 = vcmask 89088
    %v306 = vsel %vm305, %v304, %v284
    %vm307 = vcmask 97280
    %v308 = vsel %vm307, %v306, 0.0
    %v309 = vrot.slane %v308, 4
    %v310 = vadd.f32 %v308, %v309
    %v311 = vrot.slane %v310, 2
    %v312 = vadd.f32 %v310, %v311
    %v313 = vrot.slane %v312, 1
    %v314 = vadd.f32 %v312, %v313
    %v315 = vrcp.pop 8.0
    %v316 = vmul.f32 %v314, %v315
    %vm317 = vcmask 90112
    %318 = vst.msk [vmem:[%s5] sm:$0x1] %vm317, %v316
    %320 = vrot.lane.b32.xlu0 %v193, 16
    %v321 = vpop.permute.xlu0 %320
    %v323 = vsel %vm52, %v178, %v321
    %v324 = vld [vmem:[%s3] sm:$0xff]
    %v325 = vld [vmem:[%s3 + $0x8] sm:$0xff]
    %v326 = vld [vmem:[%s3 + $0x10] sm:$0xff]
    %v327 = vld [vmem:[%s3 + $0x18] sm:$0xff]
    %v328 = vld [vmem:[%s3 + $0x20] sm:$0xff]
    %v329 = vld [vmem:[%s3 + $0x28] sm:$0xff]
    %v330 = vld [vmem:[%s3 + $0x30] sm:$0xff]
    %v331 = vld [vmem:[%s3 + $0x38] sm:$0xff]
    %vm332 = vcmask 261120
    %v334 = vsel %vm332, %v323, 0
    %336 = vmatprep.subr.mxu0 0.0
    %337 = vmatpush1.msra.mxu0 0.0
    %338 = vmatprep.subr.mxu0 0.0
    %339 = vmatpush1.msra.mxu0 0.0
    %340 = vmatprep.subr.mxu0 0.0
    %341 = vmatpush1.msra.mxu0 0.0
    %342 = vmatprep.subr.mxu0 0.0
    %343 = vmatpush1.msra.mxu0 0.0
    %344 = vmatprep.subr.mxu0 0.0
    %345 = vmatpush1.msra.mxu0 0.0
    %346 = vmatprep.subr.mxu0 0.0
    %347 = vmatpush1.msra.mxu0 0.0
    %348 = vmatprep.subr.mxu0 0.0
    %349 = vmatpush1.msra.mxu0 0.0
    %350 = vmatprep.subr.mxu0 0.0
    %351 = vmatpush1.msra.mxu0 0.0
    %352 = vmatprep.subr.mxu0 0.0
    %353 = vmatpush1.msra.mxu0 0.0
    %354 = vmatprep.subr.mxu0 0.0
    %355 = vmatpush1.msra.mxu0 0.0
    %356 = vmatprep.subr.mxu0 0.0
    %357 = vmatpush1.msra.mxu0 0.0
    %358 = vmatprep.subr.mxu0 0.0
    %359 = vmatpush1.msra.mxu0 0.0
    %360 = vmatprep.subr.mxu0 %v331
    %361 = vmatpush1.msra.mxu0 %v330
    %362 = vmatprep.subr.mxu0 %v329
    %363 = vmatpush1.msra.mxu0 %v328
    %364 = vmatprep.subr.mxu0 %v327
    %365 = vmatpush1.msra.mxu0 %v326
    %366 = vmatprep.subr.mxu0 %v325
    %367 = vmatpush1.msra.mxu0 %v324
    %368 = vmatprep.subr.mxu0 0.0
    %369 = vmatpush2.msra.mxu0 0.0
    %370 = vmatprep.subr.mxu0 0.0
    %371 = vmatpush2.msra.mxu0 0.0
    %372 = vmatprep.subr.mxu0 0.0
    %373 = vmatpush2.msra.mxu0 0.0
    %374 = vmatprep.subr.mxu0 0.0
    %375 = vmatpush2.msra.mxu0 0.0
    %376 = vmatprep.subr.mxu0 0.0
    %377 = vmatpush2.msra.mxu0 0.0
    %378 = vmatprep.subr.mxu0 0.0
    %379 = vmatpush2.msra.mxu0 0.0
    %380 = vmatprep.subr.mxu0 0.0
    %381 = vmatpush2.msra.mxu0 0.0
    %382 = vmatprep.subr.mxu0 0.0
    %383 = vmatpush2.msra.mxu0 0.0
    %384 = vmatprep.subr.mxu0 0.0
    %385 = vmatpush2.msra.mxu0 0.0
    %386 = vmatprep.subr.mxu0 0.0
    %387 = vmatpush2.msra.mxu0 0.0
    %388 = vmatprep.subr.mxu0 0.0
    %389 = vmatpush2.msra.mxu0 0.0
    %390 = vmatprep.subr.mxu0 0.0
    %391 = vmatpush2.msra.mxu0 0.0
    %392 = vmatprep.subr.mxu0 0.0
    %393 = vmatpush2.msra.mxu0 0.0
    %394 = vmatprep.subr.mxu0 0.0
    %395 = vmatpush2.msra.mxu0 0.0
    %396 = vmatprep.subr.mxu0 0.0
    %397 = vmatpush2.msra.mxu0 0.0
    %398 = vmatprep.subr.mxu0 0.0
    %399 = vmatpush2.msra.mxu0 0.0
    %400 = vmatprep.mubr.f32.mxu0 0.0
    %401 = vmatmul.mubr.f32.gmra.mxu0 %v334
    %v402 = vpop.f32.mrf.mxu0
    %v403 = vadd.f32 0.0, %v402
    %v404 = vpop.f32.mrf.mxu0
    %v405 = vadd.f32 0.0, %v404
    %406 = vdwg.mxu0
    %407 = vst [vmem:[#allocation2] sm:$0xff] %v403
    %408 = vst [vmem:[#allocation2 + $0x8] sm:$0xff] %v405
    // Predicated region
    $region18: #{forward_pallas.1} parent=1 // pred_check
      _
    $region19: #{forward_pallas.1} parent=1 // pred_check_branch
      %410 = sbr.rel (0) target = $region21
    $region20: #{forward_pallas.1} parent=1 // pred_region
      %s412 = ssub.s32 256, 256
      %413 = vsyncadd [#allocation3], %s412
      %s415 = sshll.u32 [#allocation2], 4
      %s416 = int_to_ptr.vmem [resolvable:$true] %s415
      %418 = dma.vmem_to_hbm [thread:$0]  %s416, 256, %s4, [#allocation3]
    $region21: #{forward_pallas.1} parent=1 // pred_fallthru
      _
    // Predicated region
    $region22: #{forward_pallas.1} parent=1 // pred_check
      _
    $region23: #{forward_pallas.1} parent=1 // pred_check_branch
      %420 = sbr.rel (0) target = $region25
    $region24: #{forward_pallas.1} parent=1 // pred_region
      _
    $region25: #{forward_pallas.1} parent=1 // pred_fallthru
      _
    // Predicated region
    $region26: #{forward_pallas.1} parent=1 // pred_check
      _
    $region27: #{forward_pallas.1} parent=1 // pred_check_branch
      %422 = sbr.rel (0) target = $region29
    $region28: #{forward_pallas.1} parent=1 // pred_region
      %423 = dma.done [#allocation3], 256
    $region29: #{forward_pallas.1} parent=1 // pred_fallthru
      _
    // Predicated region
    $region30: #{forward_pallas.1} parent=1 // pred_check
      _
    $region31: #{forward_pallas.1} parent=1 // pred_check_branch
      %425 = sbr.rel (0) target = $region33
    $region32: #{forward_pallas.1} parent=1 // pred_region
      _
    $region33: #{forward_pallas.1} parent=1 // pred_fallthru
      _
    %426 = vsyncpa [#allocation3], 1

</llo_original>
